<compile_context>
chip_gen: v7x
topology: tpu7x:2x2x1
jax: 0.10.0
libtpu: 0.0.40
codegen_flags: <defaults>
</compile_context>

<pallas_src>
import functools

import numpy as np
import jax
import jax.numpy as jnp
from jax.experimental import pallas as pl
from jax.experimental.pallas import tpu as pltpu


# ----------------------------------------------------------------------------
# Kernel A: coordinate pooling (MXU matmul) + 1x1 convs -> fused a_h|a_w slab
# ----------------------------------------------------------------------------
def _attn_kernel(x_ref, p_ref, w1_ref, b1_ref, wh_ref, bh_ref, ww_ref, bw_ref,
                 a_ref, pooled_ref, *, H, hw_chunk, p_resident):
    t = pl.program_id(1)

    @pl.when(t == 0)
    def _init():
        pooled_ref[...] = jnp.zeros_like(pooled_ref)

    # Coordinate pooling as one lane-dense MXU matmul:
    #   (C, hw_chunk) @ (hw_chunk, H + W), accumulated over HW chunks.
    # pooled[:, :H] == mean over W, pooled[:, H:] == mean over H.
    if p_resident:
        start = t * hw_chunk
        if hw_chunk % 128 == 0:
            start = pl.multiple_of(start, 128)
        p_blk = p_ref[pl.ds(start, hw_chunk), :]
    else:
        p_blk = p_ref[...]
    pooled_ref[...] += jnp.dot(x_ref[...], p_blk,
                               preferred_element_type=jnp.float32)

    # Tail (conv1 with BN+bias folded, h_swish, conv_h/conv_w, sigmoid) runs
    # only once, on the fully accumulated pooled features.
    @pl.when(t == pl.num_programs(1) - 1)
    def _tail():
        y = jnp.dot(w1_ref[...], pooled_ref[...],
                    preferred_element_type=jnp.float32) + b1_ref[...]
        y = y * jnp.clip(y + 3.0, 0.0, 6.0) * (1.0 / 6.0)          # h_swish
        ah = jax.nn.sigmoid(
            jnp.dot(wh_ref[...], y[:, :H], preferred_element_type=jnp.float32)
            + bh_ref[...])
        aw = jax.nn.sigmoid(
            jnp.dot(ww_ref[...], y[:, H:], preferred_element_type=jnp.float32)
            + bw_ref[...])
        a_ref[...] = jnp.concatenate([ah, aw], axis=1)             # (oup, H+W)


# ----------------------------------------------------------------------------
# Kernel B: out = identity * a_h * a_w in the lane-dense (C, H*W) layout
# ----------------------------------------------------------------------------
def _apply_kernel(x_ref, a_ref, eh_ref, ew_ref, out_ref, *, H):
    # 0/1 expansion matmuls broadcast a_h over W and tile a_w over H on the
    # MXU (exact), keeping everything in the flattened lane-dense layout.
    a = a_ref[...]
    attn_h = jnp.dot(a[:, :H], eh_ref[...], preferred_element_type=jnp.float32)
    scaled = x_ref[...] * attn_h           # multiply early: shorter live range
    attn_w = jnp.dot(a[:, H:], ew_ref[...], preferred_element_type=jnp.float32)
    out_ref[...] = (scaled * attn_w).astype(out_ref.dtype)


# ----------------------------------------------------------------------------
# Cached constants & per-generation budgets
# ----------------------------------------------------------------------------
@functools.lru_cache(maxsize=None)
def _coord_constants(H, W):
    """Pooling / expansion matrices, built once per (H, W) on host."""
    HW = H * W
    pos = np.arange(HW)
    h_of, w_of = pos // W, pos % W
    pool = np.concatenate(
        [(h_of[:, None] == np.arange(H)[None, :]).astype(np.float32) / W,
         (w_of[:, None] == np.arange(W)[None, :]).astype(np.float32) / H],
        axis=1)                                                    # (HW, H+W)
    eh = (np.arange(H)[:, None] == h_of[None, :]).astype(np.float32)  # (H, HW)
    ew = (np.arange(W)[:, None] == w_of[None, :]).astype(np.float32)  # (W, HW)
    return jnp.asarray(pool), jnp.asarray(eh), jnp.asarray(ew)


@functools.lru_cache(maxsize=None)
def _tpu_vmem_capacity_bytes():
    try:
        cap = int(pltpu.get_tpu_info().vmem_capacity_bytes)
        if cap > 0:
            return cap
    except Exception:
        pass
    return 64 << 20        # conservative fallback (v7x per-TensorCore VMEM)


def _pick_hw_chunk(C, HW, target_bytes):
    """Chunk of the flattened spatial axis for the pooling pass (kernel A)."""
    if C * HW * 4 <= target_bytes or HW % 128 != 0:
        return HW
    cands = [t for t in range(128, HW + 1, 128)
             if HW % t == 0 and C * t * 4 <= target_bytes]
    if cands:
        return max(cands)
    small = [t for t in range(128, HW + 1, 128) if HW % t == 0]
    return min(small) if small else HW


def _pick_channel_tile(C, HW, target_bytes):
    """Channel tile for the multiply pass (kernel B)."""
    if C * HW * 4 <= target_bytes:
        return C
    cands = [ct for ct in range(8, C, 8)
             if C % ct == 0 and ct * HW * 4 <= target_bytes]
    if cands:
        return max(cands)
    any_div = [ct for ct in range(8, C, 8) if C % ct == 0]
    return min(any_div) if any_div else C


def _vmem_limit(need_bytes, hard_cap):
    return int(min(hard_cap, max(32 << 20, need_bytes + (8 << 20))))


# ----------------------------------------------------------------------------
# Wrapper
# ----------------------------------------------------------------------------
def coord_att(x, params):
    """x: (N, C, H, W) float32.  params: dict of weights (see init_params)."""
    N, C, H, W = x.shape
    HW = H * W
    w1, b1 = params["w1"], params["b1"]
    wh, bh = params["wh"], params["bh"]
    ww, bw = params["ww"], params["bw"]
    mip, oup = w1.shape[0], wh.shape[0]
    if oup != C:
        raise ValueError("CoordAtt broadcast multiply requires oup == inp == C")

    # --- fold BatchNorm (inference stats) + conv1 bias into conv1 weights ---
    eps = 1e-5
    scale = params["gamma"] / jnp.sqrt(params["var"] + eps)
    shift = params["beta"] - params["mean"] * scale
    w1f = w1 * scale[:, None]                                  # (mip, C)
    b1f = (scale * b1 + shift).reshape(mip, 1)
    bhc = bh.reshape(oup, 1)
    bwc = bw.reshape(oup, 1)

    # --- cached shape-only constants (built once per (H, W)) ----------------
    pool_mat, expand_h, expand_w = _coord_constants(H, W)

    # --- lane-dense view: last dim H*W maps to the 128-wide lane axis -------
    x2d = x.reshape(N, C, HW)

    # --- per-generation VMEM budgets -----------------------------------------
    cap = _tpu_vmem_capacity_bytes()
    hard_cap = max(32 << 20, min(cap - (16 << 20), int(cap * 0.78)))
    target0 = max(2 << 20, cap // 20)

    def _const_spec(shape):
        nd = len(shape)
        return pl.BlockSpec(shape, lambda n, t, _nd=nd: (0,) * _nd,
                            pipeline_mode=pl.Buffered(1))   # resident: 1 buffer

    # ---------------- phase A: fused a_h|a_w slab (N, oup, H+W) --------------
    p_bytes = HW * (H + W) * 4
    weight_bytes = (mip * C + mip + 2 * oup * mip + 2 * oup) * 4
    target = target0
    while True:
        hw_chunk = _pick_hw_chunk(C, HW, target)
        p_resident = (p_bytes <= min(24 << 20, hard_cap // 3)) or hw_chunk == HW
        need_a = (2 * C * hw_chunk * 4                         # x chunk, 2 bufs
                  + (p_bytes if p_resident else 2 * hw_chunk * (H + W) * 4)
                  + weight_bytes                               # single-buffered
                  + C * (H + W) * 4                            # pooled scratch
                  + 2 * oup * (H + W) * 4                      # fused output
                  + 2 * mip * (H + W) * 4)                     # tail temporaries
        if need_a + (4 << 20) <= hard_cap or target <= (512 << 10):
            break
        target //= 2
    n_chunks = HW // hw_chunk
    vmem_a = _vmem_limit(need_a, hard_cap)

    if p_resident:
        p_spec = _const_spec((HW, H + W))
    else:
        p_spec = pl.BlockSpec((hw_chunk, H + W), lambda n, t: (t, 0))

    a_hw = pl.pallas_call(
        functools.partial(_attn_kernel, H=H, hw_chunk=hw_chunk,
                          p_resident=p_resident),
        grid=(N, n_chunks),
        in_specs=[
            pl.BlockSpec((pl.Squeezed(), C, hw_chunk), lambda n, t: (n, 0, t)),
            p_spec,                    # pooling matrix
            _const_spec((mip, C)),     # w1 (BN folded)
            _const_spec((mip, 1)),     # folded bias
            _const_spec((oup, mip)),   # wh
            _const_spec((oup, 1)),     # bh
            _const_spec((oup, mip)),   # ww
            _const_spec((oup, 1)),     # bw
        ],
        out_specs=pl.BlockSpec((pl.Squeezed(), oup, H + W),
                               lambda n, t: (n, 0, 0)),
        out_shape=jax.ShapeDtypeStruct((N, oup, H + W), jnp.float32),
        scratch_shapes=[pltpu.VMEM((C, H + W), jnp.float32)],
        compiler_params=pltpu.CompilerParams(
            dimension_semantics=("parallel", "arbitrary"),
            vmem_limit_bytes=vmem_a),
        cost_estimate=pl.CostEstimate(
            flops=int(2 * N * C * HW * (H + W)
                      + 2 * N * mip * C * (H + W)
                      + 2 * N * oup * mip * (H + W)),
            transcendentals=int(N * oup * (H + W)),
            bytes_accessed=int(N * C * HW * 4 + p_bytes
                               + weight_bytes + N * oup * (H + W) * 4)),
    )(x2d, pool_mat, w1f, b1f, wh, bhc, ww, bwc)

    # ------- phase B: out = x * a_h * a_w, tiled over (N, C_tiles) ----------
    e_bytes = (H + W) * HW * 4
    target = target0
    while True:
        c_tile = _pick_channel_tile(C, HW, target)
        need_b = (2 * c_tile * HW * 4                         # x blocks
                  + 2 * c_tile * HW * 4                       # out blocks
                  + 2 * c_tile * (H + W) * 4                  # a blocks
                  + e_bytes                                   # Eh+Ew, 1 buffer
                  + 2 * c_tile * HW * 4)                      # attn temporaries
        if need_b + (4 << 20) <= hard_cap or target <= (512 << 10):
            break
        target //= 2
    n_ctiles = C // c_tile
    vmem_b = _vmem_limit(need_b, hard_cap)

    out2d = pl.pallas_call(
        functools.partial(_apply_kernel, H=H),
        grid=(N, n_ctiles),
        in_specs=[
            pl.BlockSpec((pl.Squeezed(), c_tile, HW), lambda n, c: (n, c, 0)),
            pl.BlockSpec((pl.Squeezed(), c_tile, H + W), lambda n, c: (n, c, 0)),
            pl.BlockSpec((H, HW), lambda n, c: (0, 0),
                         pipeline_mode=pl.Buffered(1)),
            pl.BlockSpec((W, HW), lambda n, c: (0, 0),
                         pipeline_mode=pl.Buffered(1)),
        ],
        out_specs=pl.BlockSpec((pl.Squeezed(), c_tile, HW),
                               lambda n, c: (n, c, 0)),
        out_shape=jax.ShapeDtypeStruct((N, C, HW), x.dtype),
        compiler_params=pltpu.CompilerParams(
            dimension_semantics=("parallel", "parallel"),
            vmem_limit_bytes=vmem_b),
        cost_estimate=pl.CostEstimate(
            flops=int(2 * N * C * HW * (H + W) + 2 * N * C * HW),
            transcendentals=0,
            bytes_accessed=int(2 * N * C * HW * 4
                               + N * C * (H + W) * 4 + e_bytes)),
    )(x2d, a_hw, expand_h, expand_w)

    return out2d.reshape(N, C, H, W)


# ----------------------------------------------------------------------------
# Pure-JAX reference (mirrors the PyTorch forward, NCHW) and param init
# ----------------------------------------------------------------------------
def coord_att_ref(x, params):
    N, C, H, W = x.shape
    eps = 1e-5
    x_h = jnp.mean(x, axis=3)                      # (N, C, H)
    x_w = jnp.mean(x, axis=2)                      # (N, C, W)
    y = jnp.concatenate([x_h, x_w], axis=2)        # (N, C, H+W)
    y = jnp.einsum("oc,ncl->nol", params["w1"], y) + params["b1"][None, :, None]
    scale = params["gamma"] / jnp.sqrt(params["var"] + eps)
    shift = params["beta"] - params["mean"] * scale
    y = y * scale[None, :, None] + shift[None, :, None]
    y = y * jnp.clip(y + 3.0, 0.0, 6.0) / 6.0
    y_h, y_w = y[:, :, :H], y[:, :, H:]
    a_h = jax.nn.sigmoid(jnp.einsum("om,nml->nol", params["wh"], y_h)
                         + params["bh"][None, :, None])          # (N, oup, H)
    a_w = jax.nn.sigmoid(jnp.einsum("om,nml->nol", params["ww"], y_w)
                         + params["bw"][None, :, None])          # (N, oup, W)
    return x * a_h[:, :, :, None] * a_w[:, :, None, :]


def init_params(key, inp, oup, reduction=32):
    mip = max(8, inp // reduction)
    ks = jax.random.split(key, 6)
    return {
        "w1": jax.random.normal(ks[0], (mip, inp), jnp.float32) * 0.1,
        "b1": jax.random.normal(ks[1], (mip,), jnp.float32) * 0.1,
        "gamma": jnp.ones((mip,), jnp.float32),
        "beta": jnp.zeros((mip,), jnp.float32),
        "mean": jnp.zeros((mip,), jnp.float32),
        "var": jnp.ones((mip,), jnp.float32),
        "wh": jax.random.normal(ks[2], (oup, mip), jnp.float32) * 0.1,
        "bh": jax.random.normal(ks[3], (oup,), jnp.float32) * 0.1,
        "ww": jax.random.normal(ks[4], (oup, mip), jnp.float32) * 0.1,
        "bw": jax.random.normal(ks[5], (oup,), jnp.float32) * 0.1,
    }


if __name__ == "__main__":
    key = jax.random.PRNGKey(0)
    kx, kp = jax.random.split(key)

    N, C, H, W = 2, 4, 16, 16          # inp = oup = 4, reduction = 32 -> mip = 8
    x = jax.random.normal(kx, (N, C, H, W), jnp.float32)
    params = init_params(kp, inp=C, oup=C, reduction=32)

    out = jax.block_until_ready(coord_att(x, params))
    ref = coord_att_ref(x, params)

    assert out.shape == (N, C, H, W)
    assert jnp.allclose(out, ref, atol=1e-5, rtol=1e-5), "mismatch vs reference"

    print("KERNEL_OK")
</pallas_src>

<mosaic_0001>
module attributes {stable_mosaic.version = 11 : i64} {
  func.func @_attn_kernel(%arg0: i32, %arg1: i32, %arg2: memref<1x4x256xf32, #tpu.memory_space<vmem>>, %arg3: memref<256x32xf32, #tpu.memory_space<vmem>>, %arg4: memref<8x4xf32, #tpu.memory_space<vmem>>, %arg5: memref<8x1xf32, #tpu.memory_space<vmem>>, %arg6: memref<4x8xf32, #tpu.memory_space<vmem>>, %arg7: memref<4x1xf32, #tpu.memory_space<vmem>>, %arg8: memref<4x8xf32, #tpu.memory_space<vmem>>, %arg9: memref<4x1xf32, #tpu.memory_space<vmem>>, %arg10: memref<1x4x32xf32, #tpu.memory_space<vmem>>, %arg11: memref<4x32xf32, #tpu.memory_space<vmem>>) attributes {dimension_semantics = [#tpu.dimension_semantics<parallel>, #tpu.dimension_semantics<arbitrary>], iteration_bounds = array<i64: 2, 1>, scalar_prefetch = 0 : i64, scratch_operands = 1 : i64, tpu.core_type = #tpu.core_type<tc>, window_params = [{transform_indices = @transform_0, window_bounds = array<i64: 1, 4, 256>}, {pipeline_mode = #tpu.pipeline_mode<synchronous>, transform_indices = @transform_1, window_bounds = array<i64: 256, 32>}, {pipeline_mode = #tpu.pipeline_mode<synchronous>, transform_indices = @transform_2, window_bounds = array<i64: 8, 4>}, {pipeline_mode = #tpu.pipeline_mode<synchronous>, transform_indices = @transform_3, window_bounds = array<i64: 8, 1>}, {pipeline_mode = #tpu.pipeline_mode<synchronous>, transform_indices = @transform_4, window_bounds = array<i64: 4, 8>}, {pipeline_mode = #tpu.pipeline_mode<synchronous>, transform_indices = @transform_5, window_bounds = array<i64: 4, 1>}, {pipeline_mode = #tpu.pipeline_mode<synchronous>, transform_indices = @transform_6, window_bounds = array<i64: 4, 8>}, {pipeline_mode = #tpu.pipeline_mode<synchronous>, transform_indices = @transform_7, window_bounds = array<i64: 4, 1>}, {transform_indices = @transform_8, window_bounds = array<i64: 1, 4, 32>}]} {
    %c0_i32 = arith.constant 0 : i32
    %0 = arith.cmpi eq, %arg1, %c0_i32 : i32
    %1 = arith.extui %0 : i1 to i32
    %c0_i32_0 = arith.constant 0 : i32
    %2 = arith.cmpi ne, %1, %c0_i32_0 : i32
    scf.if %2 {
      %cst_10 = arith.constant 0.000000e+00 : f32
      %16 = vector.broadcast %cst_10 : f32 to vector<4x32xf32>
      %c0_11 = arith.constant 0 : index
      %c0_12 = arith.constant 0 : index
      %17 = vector.load %arg11[%c0_11, %c0_12] : memref<4x32xf32, #tpu.memory_space<vmem>>, vector<4x32xf32>
      tpu.vector_store %arg11[%c0_11, %c0_12], %16 {strides = array<i32>} : memref<4x32xf32, #tpu.memory_space<vmem>>, vector<4x32xf32>,
    } else {
    }
    %c256_i32 = arith.constant 256 : i32
    %3 = arith.muli %arg1, %c256_i32 : i32
    %4 = tpu.assume_multiple %3, 128 : i32
    %5 = arith.index_cast %4 : i32 to index
    %c0 = arith.constant 0 : index
    %6 = vector.load %arg3[%5, %c0] : memref<256x32xf32, #tpu.memory_space<vmem>>, vector<256x32xf32>
    %c0_1 = arith.constant 0 : index
    %c0_2 = arith.constant 0 : index
    %7 = vector.load %arg11[%c0_1, %c0_2] : memref<4x32xf32, #tpu.memory_space<vmem>>, vector<4x32xf32>
    %c0_3 = arith.constant 0 : index
    %c0_4 = arith.constant 0 : index
    %c0_5 = arith.constant 0 : index
    %8 = vector.load %arg2[%c0_3, %c0_4, %c0_5] : memref<1x4x256xf32, #tpu.memory_space<vmem>>, vector<1x4x256xf32>
    %9 = vector.shape_cast %8 : vector<1x4x256xf32> to vector<4x256xf32>
    %cst = arith.constant dense<0.000000e+00> : vector<4x32xf32>
    %10 = tpu.matmul %9, %6, %cst {dimension_numbers = #tpu.dot_dimension_numbers<[1], [0], [0], [1], [0, 0, 1, 1], [], []>} : vector<4x256xf32>, vector<256x32xf32>, vector<4x32xf32> -> vector<4x32xf32>
    %11 = arith.addf %7, %10 : vector<4x32xf32>
    %c0_6 = arith.constant 0 : index
    %c0_7 = arith.constant 0 : index
    %12 = vector.load %arg11[%c0_6, %c0_7] : memref<4x32xf32, #tpu.memory_space<vmem>>, vector<4x32xf32>
    tpu.vector_store %arg11[%c0_6, %c0_7], %11 {strides = array<i32>} : memref<4x32xf32, #tpu.memory_space<vmem>>, vector<4x32xf32>,
    %c0_i32_8 = arith.constant 0 : i32
    %13 = arith.cmpi eq, %arg1, %c0_i32_8 : i32
    %14 = arith.extui %13 : i1 to i32
    %c0_i32_9 = arith.constant 0 : i32
    %15 = arith.cmpi ne, %14, %c0_i32_9 : i32
    scf.if %15 {
      %c0_10 = arith.constant 0 : index
      %c0_11 = arith.constant 0 : index
      %16 = vector.load %arg4[%c0_10, %c0_11] : memref<8x4xf32, #tpu.memory_space<vmem>>, vector<8x4xf32>
      %c0_12 = arith.constant 0 : index
      %c0_13 = arith.constant 0 : index
      %17 = vector.load %arg11[%c0_12, %c0_13] : memref<4x32xf32, #tpu.memory_space<vmem>>, vector<4x32xf32>
      %cst_14 = arith.constant dense<0.000000e+00> : vector<8x32xf32>
      %18 = tpu.matmul %16, %17, %cst_14 {dimension_numbers = #tpu.dot_dimension_numbers<[1], [0], [0], [1], [0, 0, 1, 1], [], []>} : vector<8x4xf32>, vector<4x32xf32>, vector<8x32xf32> -> vector<8x32xf32>
      %c0_15 = arith.constant 0 : index
      %c0_16 = arith.constant 0 : index
      %19 = vector.load %arg5[%c0_15, %c0_16] : memref<8x1xf32, #tpu.memory_space<vmem>>, vector<8x1xf32>
      %20 = vector.broadcast %19 : vector<8x1xf32> to vector<8x32xf32>
      %21 = arith.addf %18, %20 : vector<8x32xf32>
      %cst_17 = arith.constant 3.000000e+00 : f32
      %22 = vector.broadcast %cst_17 : f32 to vector<8x32xf32>
      %23 = arith.addf %21, %22 : vector<8x32xf32>
      %cst_18 = arith.constant 0.000000e+00 : f32
      %cst_19 = arith.constant 6.000000e+00 : f32
      %24 = vector.broadcast %cst_18 : f32 to vector<8x32xf32>
      %25 = arith.maximumf %24, %23 : vector<8x32xf32>
      %26 = vector.broadcast %cst_19 : f32 to vector<8x32xf32>
      %27 = arith.minimumf %26, %25 : vector<8x32xf32>
      %28 = arith.mulf %21, %27 : vector<8x32xf32>
      %cst_20 = arith.constant 0.166666672 : f32
      %29 = vector.broadcast %cst_20 : f32 to vector<8x32xf32>
      %30 = arith.mulf %28, %29 : vector<8x32xf32>
      %c0_21 = arith.constant 0 : index
      %c0_22 = arith.constant 0 : index
      %31 = vector.load %arg6[%c0_21, %c0_22] : memref<4x8xf32, #tpu.memory_space<vmem>>, vector<4x8xf32>
      %32 = vector.extract_strided_slice %30 {offsets = [0, 0], sizes = [8, 16], strides = [1, 1]} : vector<8x32xf32> to vector<8x16xf32>
      %cst_23 = arith.constant dense<0.000000e+00> : vector<4x16xf32>
      %33 = tpu.matmul %31, %32, %cst_23 {dimension_numbers = #tpu.dot_dimension_numbers<[1], [0], [0], [1], [0, 0, 1, 1], [], []>} : vector<4x8xf32>, vector<8x16xf32>, vector<4x16xf32> -> vector<4x16xf32>
      %c0_24 = arith.constant 0 : index
      %c0_25 = arith.constant 0 : index
      %34 = vector.load %arg7[%c0_24, %c0_25] : memref<4x1xf32, #tpu.memory_space<vmem>>, vector<4x1xf32>
      %35 = vector.broadcast %34 : vector<4x1xf32> to vector<4x16xf32>
      %36 = arith.addf %33, %35 : vector<4x16xf32>
      %37 = arith.negf %36 : vector<4x16xf32>
      %38 = math.exp %37 : vector<4x16xf32>
      %cst_26 = arith.constant 1.000000e+00 : f32
      %39 = vector.broadcast %cst_26 : f32 to vector<4x16xf32>
      %40 = arith.addf %39, %38 : vector<4x16xf32>
      %41 = arith.divf %39, %40 : vector<4x16xf32>
      %c0_27 = arith.constant 0 : index
      %c0_28 = arith.constant 0 : index
      %42 = vector.load %arg8[%c0_27, %c0_28] : memref<4x8xf32, #tpu.memory_space<vmem>>, vector<4x8xf32>
      %43 = vector.extract_strided_slice %30 {offsets = [0, 16], sizes = [8, 16], strides = [1, 1]} : vector<8x32xf32> to vector<8x16xf32>
      %cst_29 = arith.constant dense<0.000000e+00> : vector<4x16xf32>
      %44 = tpu.matmul %42, %43, %cst_29 {dimension_numbers = #tpu.dot_dimension_numbers<[1], [0], [0], [1], [0, 0, 1, 1], [], []>} : vector<4x8xf32>, vector<8x16xf32>, vector<4x16xf32> -> vector<4x16xf32>
      %c0_30 = arith.constant 0 : index
      %c0_31 = arith.constant 0 : index
      %45 = vector.load %arg9[%c0_30, %c0_31] : memref<4x1xf32, #tpu.memory_space<vmem>>, vector<4x1xf32>
      %46 = vector.broadcast %45 : vector<4x1xf32> to vector<4x16xf32>
      %47 = arith.addf %44, %46 : vector<4x16xf32>
      %48 = arith.negf %47 : vector<4x16xf32>
      %49 = math.exp %48 : vector<4x16xf32>
      %cst_32 = arith.constant 1.000000e+00 : f32
      %50 = vector.broadcast %cst_32 : f32 to vector<4x16xf32>
      %51 = arith.addf %50, %49 : vector<4x16xf32>
      %52 = arith.divf %50, %51 : vector<4x16xf32>
      %53 = tpu.concatenate %41, %52 in 1 : vector<4x16xf32>, vector<4x16xf32> -> vector<4x32xf32>
      %c0_33 = arith.constant 0 : index
      %c0_34 = arith.constant 0 : index
      %c0_35 = arith.constant 0 : index
      %54 = vector.load %arg10[%c0_33, %c0_34, %c0_35] : memref<1x4x32xf32, #tpu.memory_space<vmem>>, vector<1x4x32xf32>
      %55 = vector.shape_cast %54 : vector<1x4x32xf32> to vector<4x32xf32>
      %56 = vector.shape_cast %53 : vector<4x32xf32> to vector<1x4x32xf32>
      tpu.vector_store %arg10[%c0_33, %c0_34, %c0_35], %56 {strides = array<i32>} : memref<1x4x32xf32, #tpu.memory_space<vmem>>, vector<1x4x32xf32>,
    } else {
    }
    return
  }
  func.func @transform_0(%arg0: i32, %arg1: i32) -> (i32, i32, i32) {
    %c0_i32 = arith.constant 0 : i32
    %c0_i32_0 = arith.constant 0 : i32
    return %arg0, %c0_i32, %arg1 : i32, i32, i32
  }
  func.func @transform_1(%arg0: i32, %arg1: i32) -> (i32, i32) {
    %c0_i32 = arith.constant 0 : i32
    %c0_i32_0 = arith.constant 0 : i32
    %c0_i32_1 = arith.constant 0 : i32
    return %c0_i32, %c0_i32_0 : i32, i32
  }
  func.func @transform_2(%arg0: i32, %arg1: i32) -> (i32, i32) {
    %c0_i32 = arith.constant 0 : i32
    %c0_i32_0 = arith.constant 0 : i32
    %c0_i32_1 = arith.constant 0 : i32
    return %c0_i32, %c0_i32_0 : i32, i32
  }
  func.func @transform_3(%arg0: i32, %arg1: i32) -> (i32, i32) {
    %c0_i32 = arith.constant 0 : i32
    %c0_i32_0 = arith.constant 0 : i32
    %c0_i32_1 = arith.constant 0 : i32
    return %c0_i32, %c0_i32_0 : i32, i32
  }
  func.func @transform_4(%arg0: i32, %arg1: i32) -> (i32, i32) {
    %c0_i32 = arith.constant 0 : i32
    %c0_i32_0 = arith.constant 0 : i32
    %c0_i32_1 = arith.constant 0 : i32
    return %c0_i32, %c0_i32_0 : i32, i32
  }
  func.func @transform_5(%arg0: i32, %arg1: i32) -> (i32, i32) {
    %c0_i32 = arith.constant 0 : i32
    %c0_i32_0 = arith.constant 0 : i32
    %c0_i32_1 = arith.constant 0 : i32
    return %c0_i32, %c0_i32_0 : i32, i32
  }
  func.func @transform_6(%arg0: i32, %arg1: i32) -> (i32, i32) {
    %c0_i32 = arith.constant 0 : i32
    %c0_i32_0 = arith.constant 0 : i32
    %c0_i32_1 = arith.constant 0 : i32
    return %c0_i32, %c0_i32_0 : i32, i32
  }
  func.func @transform_7(%arg0: i32, %arg1: i32) -> (i32, i32) {
    %c0_i32 = arith.constant 0 : i32
    %c0_i32_0 = arith.constant 0 : i32
    %c0_i32_1 = arith.constant 0 : i32
    return %c0_i32, %c0_i32_0 : i32, i32
  }
  func.func @transform_8(%arg0: i32, %arg1: i32) -> (i32, i32, i32) {
    %c0_i32 = arith.constant 0 : i32
    %c0_i32_0 = arith.constant 0 : i32
    %c0_i32_1 = arith.constant 0 : i32
    return %arg0, %c0_i32, %c0_i32_0 : i32, i32, i32
  }
}

</mosaic_0001>

<llo_original>
// kernel: tpu_custom_call.1
$region0: #{tpu_custom_call.1}
  #allocation0 [shape = 'u32[]', space=smem, size = 0x4, offset = 0x4, fixed_abs, tag = 'smem constant byte address 0x4 - core index']
  #allocation1 [shape = 'u32[144,128]{1,0:T(1,128)}', space=vmem, size = 0x12000, scoped, tag = 'internal scratch']
  #allocation2 [shape = 'f32[4,32]{1,0:T(4,128)}', space=vmem, size = 0x800, scoped, tag = 'scratch operand']
  %s0 = inlined_call_operand.vmem [shape: f32[2,4,256], index: 0, kind: input, shape index: {}]
  %s1 = inlined_call_operand.vmem [shape: f32[256,32], index: 1, kind: input, shape index: {}]
  %s2 = inlined_call_operand.vmem [shape: f32[8,4], index: 2, kind: input, shape index: {}]
  %s3 = inlined_call_operand.vmem [shape: f32[8,1], index: 3, kind: input, shape index: {}]
  %s4 = inlined_call_operand.vmem [shape: f32[4,8], index: 4, kind: input, shape index: {}]
  %s5 = inlined_call_operand.vmem [shape: f32[4,1], index: 5, kind: input, shape index: {}]
  %s6 = inlined_call_operand.vmem [shape: f32[4,8], index: 6, kind: input, shape index: {}]
  %s7 = inlined_call_operand.vmem [shape: f32[4,1], index: 7, kind: input, shape index: {}]
  %s8 = inlined_call_operand.hbm [shape: f32[2,4,32], index: 8, kind: output, shape index: {}]
  %s9 = sld [smem:[#allocation0]]
  $region73: #{tpu_custom_call.1} parent=0
    _
  %s11 = ssub.s32 1, %s9
  %s12 = scalar_select 0, %s11, %s9
  $region1: #{tpu_custom_call.1} parent=0
    #allocation3 [shape = 'u8[4096]{0}', space=vmem, size = 0x1000, scoped, tag = 'output window, operand 0']
    #allocation4 [shape = 's32[2]{0}', space=sflag, size = 0x8, scoped, tag = 'scoped memory for tpu_custom_call.1']
    %13 = vsyncpa [#allocation4], 0
    %s14 = scalar_lea.sflag [#allocation4], 1
    %15 = vsyncpa %s14, 0
    loop: start=0, step=1, limit=4
    $region2: #{tpu_custom_call.1} parent=1 // loop_pre_header
      _
    $region3: #{tpu_custom_call.1} parent=1 // loop_header
      %s17 = sphi 0, %s21
      %p18 = scmp.ge.s32.totalorder %s17, 4
      %s24 = sphi 0, %s36
      %s25 = sphi 0, %s32
      %s26 = sphi 0, %s24
      %s27 = sphi 0, %s25
      %s28 = sphi 0, %s26
      %s29 = sphi 0, %s27
      %s41 = sphi 0, %s43
      %s44 = sphi 0, %s41
      %s45 = sphi 0, %s44
      %s61 = sphi 0, %s45
      %s65 = sphi 0, %s65
      %s67 = sphi 0, %s65
      %s68 = sphi 0, %s67
      %s82 = sphi 0, %s68
      %s86 = sphi 0, %s86
      %s88 = sphi 0, %s86
      %s89 = sphi 0, %s88
      %s103 = sphi 0, %s89
      %s107 = sphi 0, %s107
      %s109 = sphi 0, %s107
      %s110 = sphi 0, %s109
      %s124 = sphi 0, %s110
      %s128 = sphi 0, %s128
      %s130 = sphi 0, %s128
      %s131 = sphi 0, %s130
      %s145 = sphi 0, %s131
      %s149 = sphi 0, %s149
      %s151 = sphi 0, %s149
      %s152 = sphi 0, %s151
      %s166 = sphi 0, %s152
      %s170 = sphi 0, %s170
      %s172 = sphi 0, %s170
      %s173 = sphi 0, %s172
      %s187 = sphi 0, %s173
      %s191 = sphi 0, %s191
      %s193 = sphi 0, %s191
      %s194 = sphi 0, %s193
      %s208 = sphi 0, %s194
      %s214 = sphi 0, %s216
      %s217 = sphi 0, %s214
      %s218 = sphi 0, %s217
      %s234 = sphi 0, %s218
    $region4: #{tpu_custom_call.1} parent=1 // loop_header_branch
      %20 = sbr.rel (%p18) target = $region8
    $region5: #{tpu_custom_call.1} parent=1 // loop_body
      %s22 = ssub.s32 %s17, 1
      %s23 = ssub.s32 %s17, 2
      %s30 = sadd.s32 1, %s25
      %p31 = scmp.ge.s32.totalorder %s30, 1
      %s32 = scalar_select %p31, 0, %s30
      %s33 = sadd.s32 1, %s24
      %s34 = scalar_select %p31, %s33, %s24
      %p35 = scmp.ge.s32.totalorder %s34, 2
      %s36 = scalar_select %p35, 0, %s34
      %s37 = ssub.s32 %s24, %s36
      %s38 = ssub.s32 %s25, %s32
      %s39 = sor.u32 %s37, %s38
      %p40 = scmp.eq.s32.totalorder %s39, 0
      %s42 = sadd.s32 %s41, 1
      %s43 = scalar_select %p40, %s41, %s42
      %p46 = pneg %p40
      %p47 = scmp.eq.s32.totalorder %s17, 1
      %p48 = por %p46, %p47
      %p49 = scmp.ne.s32.totalorder %s41, %s44
      %p50 = scmp.eq.s32.totalorder %s17, 0
      %p51 = por %p49, %p50
      %p52 = scmp.ne.s32.totalorder %s41, %s44
      %p53 = scmp.eq.s32.totalorder %s22, 1
      %p54 = por %p52, %p53
      %p55 = scmp.ne.s32.totalorder %s44, %s45
      %p56 = scmp.eq.s32.totalorder %s22, 0
      %p57 = por %p55, %p56
      %p58 = scmp.ne.s32.totalorder %s44, %s45
      %p59 = scmp.eq.s32.totalorder %s23, 1
      %p60 = por %p58, %p59
      %p62 = scmp.ne.s32.totalorder %s45, %s61
      %p63 = scmp.eq.s32.totalorder %s23, 0
      %p64 = por %p62, %p63
      %s66 = sadd.s32 %s65, 1
      %p69 = scmp.eq.s32.totalorder %s17, 1
      %p70 = scmp.ne.s32.totalorder %s65, %s67
      %p71 = scmp.eq.s32.totalorder %s17, 0
      %p72 = por %p70, %p71
      %p73 = scmp.ne.s32.totalorder %s65, %s67
      %p74 = scmp.eq.s32.totalorder %s22, 1
      %p75 = por %p73, %p74
      %p76 = scmp.ne.s32.totalorder %s67, %s68
      %p77 = scmp.eq.s32.totalorder %s22, 0
      %p78 = por %p76, %p77
      %p79 = scmp.ne.s32.totalorder %s67, %s68
      %p80 = scmp.eq.s32.totalorder %s23, 1
      %p81 = por %p79, %p80
      %p83 = scmp.ne.s32.totalorder %s68, %s82
      %p84 = scmp.eq.s32.totalorder %s23, 0
      %p85 = por %p83, %p84
      %s87 = sadd.s32 %s86, 1
      %p90 = scmp.eq.s32.totalorder %s17, 1
      %p91 = scmp.ne.s32.totalorder %s86, %s88
      %p92 = scmp.eq.s32.totalorder %s17, 0
      %p93 = por %p91, %p92
      %p94 = scmp.ne.s32.totalorder %s86, %s88
      %p95 = scmp.eq.s32.totalorder %s22, 1
      %p96 = por %p94, %p95
      %p97 = scmp.ne.s32.totalorder %s88, %s89
      %p98 = scmp.eq.s32.totalorder %s22, 0
      %p99 = por %p97, %p98
      %p100 = scmp.ne.s32.totalorder %s88, %s89
      %p101 = scmp.eq.s32.totalorder %s23, 1
      %p102 = por %p100, %p101
      %p104 = scmp.ne.s32.totalorder %s89, %s103
      %p105 = scmp.eq.s32.totalorder %s23, 0
      %p106 = por %p104, %p105
      %s108 = sadd.s32 %s107, 1
      %p111 = scmp.eq.s32.totalorder %s17, 1
      %p112 = scmp.ne.s32.totalorder %s107, %s109
      %p113 = scmp.eq.s32.totalorder %s17, 0
      %p114 = por %p112, %p113
      %p115 = scmp.ne.s32.totalorder %s107, %s109
      %p116 = scmp.eq.s32.totalorder %s22, 1
      %p117 = por %p115, %p116
      %p118 = scmp.ne.s32.totalorder %s109, %s110
      %p119 = scmp.eq.s32.totalorder %s22, 0
      %p120 = por %p118, %p119
      %p121 = scmp.ne.s32.totalorder %s109, %s110
      %p122 = scmp.eq.s32.totalorder %s23, 1
      %p123 = por %p121, %p122
      %p125 = scmp.ne.s32.totalorder %s110, %s124
      %p126 = scmp.eq.s32.totalorder %s23, 0
      %p127 = por %p125, %p126
      %s129 = sadd.s32 %s128, 1
      %p132 = scmp.eq.s32.totalorder %s17, 1
      %p133 = scmp.ne.s32.totalorder %s128, %s130
      %p134 = scmp.eq.s32.totalorder %s17, 0
      %p135 = por %p133, %p134
      %p136 = scmp.ne.s32.totalorder %s128, %s130
      %p137 = scmp.eq.s32.totalorder %s22, 1
      %p138 = por %p136, %p137
      %p139 = scmp.ne.s32.totalorder %s130, %s131
      %p140 = scmp.eq.s32.totalorder %s22, 0
      %p141 = por %p139, %p140
      %p142 = scmp.ne.s32.totalorder %s130, %s131
      %p143 = scmp.eq.s32.totalorder %s23, 1
      %p144 = por %p142, %p143
      %p146 = scmp.ne.s32.totalorder %s131, %s145
      %p147 = scmp.eq.s32.totalorder %s23, 0
      %p148 = por %p146, %p147
      %s150 = sadd.s32 %s149, 1
      %p153 = scmp.eq.s32.totalorder %s17, 1
      %p154 = scmp.ne.s32.totalorder %s149, %s151
      %p155 = scmp.eq.s32.totalorder %s17, 0
      %p156 = por %p154, %p155
      %p157 = scmp.ne.s32.totalorder %s149, %s151
      %p158 = scmp.eq.s32.totalorder %s22, 1
      %p159 = por %p157, %p158
      %p160 = scmp.ne.s32.totalorder %s151, %s152
      %p161 = scmp.eq.s32.totalorder %s22, 0
      %p162 = por %p160, %p161
      %p163 = scmp.ne.s32.totalorder %s151, %s152
      %p164 = scmp.eq.s32.totalorder %s23, 1
      %p165 = por %p163, %p164
      %p167 = scmp.ne.s32.totalorder %s152, %s166
      %p168 = scmp.eq.s32.totalorder %s23, 0
      %p169 = por %p167, %p168
      %s171 = sadd.s32 %s170, 1
      %p174 = scmp.eq.s32.totalorder %s17, 1
      %p175 = scmp.ne.s32.totalorder %s170, %s172
      %p176 = scmp.eq.s32.totalorder %s17, 0
      %p177 = por %p175, %p176
      %p178 = scmp.ne.s32.totalorder %s170, %s172
      %p179 = scmp.eq.s32.totalorder %s22, 1
      %p180 = por %p178, %p179
      %p181 = scmp.ne.s32.totalorder %s172, %s173
      %p182 = scmp.eq.s32.totalorder %s22, 0
      %p183 = por %p181, %p182
      %p184 = scmp.ne.s32.totalorder %s172, %s173
      %p185 = scmp.eq.s32.totalorder %s23, 1
      %p186 = por %p184, %p185
      %p188 = scmp.ne.s32.totalorder %s173, %s187
      %p189 = scmp.eq.s32.totalorder %s23, 0
      %p190 = por %p188, %p189
      %s192 = sadd.s32 %s191, 1
      %p195 = scmp.eq.s32.totalorder %s17, 1
      %p196 = scmp.ne.s32.totalorder %s191, %s193
      %p197 = scmp.eq.s32.totalorder %s17, 0
      %p198 = por %p196, %p197
      %p199 = scmp.ne.s32.totalorder %s191, %s193
      %p200 = scmp.eq.s32.totalorder %s22, 1
      %p201 = por %p199, %p200
      %p202 = scmp.ne.s32.totalorder %s193, %s194
      %p203 = scmp.eq.s32.totalorder %s22, 0
      %p204 = por %p202, %p203
      %p205 = scmp.ne.s32.totalorder %s193, %s194
      %p206 = scmp.eq.s32.totalorder %s23, 1
      %p207 = por %p205, %p206
      %p209 = scmp.ne.s32.totalorder %s194, %s208
      %p210 = scmp.eq.s32.totalorder %s23, 0
      %p211 = por %p209, %p210
      %s212 = ssub.s32 %s24, %s36
      %p213 = scmp.eq.s32.totalorder %s212, 0
      %s215 = sadd.s32 %s214, 1
      %s216 = scalar_select %p213, %s214, %s215
      %p219 = pneg %p213
      %p220 = scmp.eq.s32.totalorder %s17, 1
      %p221 = por %p219, %p220
      %p222 = scmp.ne.s32.totalorder %s214, %s217
      %p223 = scmp.eq.s32.totalorder %s17, 0
      %p224 = por %p222, %p223
      %p225 = scmp.ne.s32.totalorder %s214, %s217
      %p226 = scmp.eq.s32.totalorder %s22, 1
      %p227 = por %p225, %p226
      %p228 = scmp.ne.s32.totalorder %s217, %s218
      %p229 = scmp.eq.s32.totalorder %s22, 0
      %p230 = por %p228, %p229
      %p231 = scmp.ne.s32.totalorder %s217, %s218
      %p232 = scmp.eq.s32.totalorder %s23, 1
      %p233 = por %p231, %p232
      %p235 = scmp.ne.s32.totalorder %s218, %s234
      %p236 = scmp.eq.s32.totalorder %s23, 0
      %p237 = por %p235, %p236
      %p238 = scmp.le.s32.totalorder 1, %s17
      %p239 = scmp.lt.s32.totalorder %s17, 3
      %p240 = pnand %p238, %p239
      %p241 = pneg %p240
      // Predicated region
      $region9: #{tpu_custom_call.1} parent=5 // pred_check
        _
      $region10: #{tpu_custom_call.1} parent=5 // pred_check_branch
        %243 = sbr.rel (%p240) target = $region12
      $region11: #{tpu_custom_call.1} parent=5 // pred_region
        %s244 = ssub.s32 %s17, 1
        // Predicated region
        $region13: #{tpu_custom_call.1} parent=11 // pred_check
          %p245 = pneg %p78
        $region14: #{tpu_custom_call.1} parent=11 // pred_check_branch
          %247 = sbr.rel (%p245) target = $region16
        $region15: #{tpu_custom_call.1} parent=11 // pred_region
          _
        $region16: #{tpu_custom_call.1} parent=11 // pred_fallthru
          _
        // Predicated region
        $region17: #{tpu_custom_call.1} parent=11 // pred_check
          %p248 = pneg %p99
        $region18: #{tpu_custom_call.1} parent=11 // pred_check_branch
          %250 = sbr.rel (%p248) target = $region20
        $region19: #{tpu_custom_call.1} parent=11 // pred_region
          _
        $region20: #{tpu_custom_call.1} parent=11 // pred_fallthru
          _
        // Predicated region
        $region21: #{tpu_custom_call.1} parent=11 // pred_check
          %p251 = pneg %p120
        $region22: #{tpu_custom_call.1} parent=11 // pred_check_branch
          %253 = sbr.rel (%p251) target = $region24
        $region23: #{tpu_custom_call.1} parent=11 // pred_region
          _
        $region24: #{tpu_custom_call.1} parent=11 // pred_fallthru
          _
        // Predicated region
        $region25: #{tpu_custom_call.1} parent=11 // pred_check
          %p254 = pneg %p141
        $region26: #{tpu_custom_call.1} parent=11 // pred_check_branch
          %256 = sbr.rel (%p254) target = $region28
        $region27: #{tpu_custom_call.1} parent=11 // pred_region
          _
        $region28: #{tpu_custom_call.1} parent=11 // pred_fallthru
          _
        // Predicated region
        $region29: #{tpu_custom_call.1} parent=11 // pred_check
          %p257 = pneg %p162
        $region30: #{tpu_custom_call.1} parent=11 // pred_check_branch
          %259 = sbr.rel (%p257) target = $region32
        $region31: #{tpu_custom_call.1} parent=11 // pred_region
          _
        $region32: #{tpu_custom_call.1} parent=11 // pred_fallthru
          _
        // Predicated region
        $region33: #{tpu_custom_call.1} parent=11 // pred_check
          %p260 = pneg %p183
        $region34: #{tpu_custom_call.1} parent=11 // pred_check_branch
          %262 = sbr.rel (%p260) target = $region36
        $region35: #{tpu_custom_call.1} parent=11 // pred_region
          _
        $region36: #{tpu_custom_call.1} parent=11 // pred_fallthru
          _
        // Predicated region
        $region37: #{tpu_custom_call.1} parent=11 // pred_check
          %p263 = pneg %p204
        $region38: #{tpu_custom_call.1} parent=11 // pred_check_branch
          %265 = sbr.rel (%p263) target = $region40
        $region39: #{tpu_custom_call.1} parent=11 // pred_region
          _
        $region40: #{tpu_custom_call.1} parent=11 // pred_fallthru
          _
      $region12: #{tpu_custom_call.1} parent=5 // pred_fallthru
        _
      %p266 = scmp.lt.s32.totalorder %s17, 2
      // Predicated region
      $region41: #{tpu_custom_call.1} parent=5 // pred_check
        %p267 = pneg %p266
      $region42: #{tpu_custom_call.1} parent=5 // pred_check_branch
        %269 = sbr.rel (%p267) target = $region44
      $region43: #{tpu_custom_call.1} parent=5 // pred_region
        // Predicated region
        $region45: #{tpu_custom_call.1} parent=43 // pred_check
          %p270 = pneg %p51
        $region46: #{tpu_custom_call.1} parent=43 // pred_check_branch
          %272 = sbr.rel (%p270) target = $region48
        $region47: #{tpu_custom_call.1} parent=43 // pred_region
          %s273 = smul.u32 2, %s25
          %p274 = scmp.lt.s32.totalorder %s24, 1
          %s275 = scalar_select %p274, %s24, 1
          %p276 = scmp.lt.s32.totalorder %s273, 1
          %s277 = scalar_select %p276, %s273, 1
          %s278 = smul.addr %s275, 2
          %s279 = sadd.s32 %s277, %s278
          %s280 = smul.addr %s279, 4
          %s281 = scalar_lea.vmem %s0, %s280
          %s282 = smul.u32 2, %s25
        $region48: #{tpu_custom_call.1} parent=43 // pred_fallthru
          _
      $region44: #{tpu_custom_call.1} parent=5 // pred_fallthru
        _
      %p283 = scmp.le.s32.totalorder 1, %s17
      %p284 = scmp.lt.s32.totalorder %s17, 3
      %p285 = pnand %p283, %p284
      %p286 = pneg %p285
      // Predicated region
      $region49: #{tpu_custom_call.1} parent=5 // pred_check
        _
      $region50: #{tpu_custom_call.1} parent=5 // pred_check_branch
        %288 = sbr.rel (%p285) target = $region52
      $region51: #{tpu_custom_call.1} parent=5 // pred_region
        %s289 = ssub.s32 %s17, 1
        %s290 = smul.u32 2, %s27
        %p291 = scmp.lt.s32.totalorder %s26, 1
        %s292 = scalar_select %p291, %s26, 1
        %p293 = scmp.lt.s32.totalorder %s290, 1
        %s294 = scalar_select %p293, %s290, 1
        %s295 = smul.addr %s292, 2
        %s296 = sadd.s32 %s294, %s295
        %s297 = smul.addr %s296, 4
        %s298 = scalar_lea.vmem %s0, %s297
        %p299 = pneg %p57
        %p300 = pneg %p54
        %p301 = pneg %p78
        %p302 = pneg %p75
        %p303 = pneg %p99
        %p304 = pneg %p96
        %p305 = pneg %p120
        %p306 = pneg %p117
        %p307 = pneg %p141
        %p308 = pneg %p138
        %p309 = pneg %p162
        %p310 = pneg %p159
        %p311 = pneg %p183
        %p312 = pneg %p180
        %p313 = pneg %p204
        %p314 = pneg %p201
        %p315 = pneg %p230
        %p316 = pneg %p227
        %s317 = sand.u32 %s217, 1
        %s318 = scalar_lea.sflag [#allocation4], %s317
        %s319 = sand.u32 %s217, 1
        %s320 = smul.addr %s319, 4
        %s321 = scalar_lea.vmem [#allocation3], %s320
        %s322 = smul.u32 2, %s27
        %p323 = scmp.lt.s32.totalorder %s26, 1
        %s324 = scalar_select %p323, %s26, 1
        %p325 = scmp.lt.s32.totalorder %s322, 1
        %s326 = scalar_select %p325, %s322, 1
        %s327 = smul.addr %s324, 2
        %s328 = sadd.s32 %s326, %s327
        %s329 = smul.addr %s328, 4
        %s330 = scalar_lea.vmem %s0, %s329
        %s331 = smul.u32 2, %s27
        %p332 = scmp.eq.s32.totalorder %s27, 0
        // Predicated region
        $region53: #{tpu_custom_call.1} parent=51 // pred_check
          %p333 = pneg %p332
        $region54: #{tpu_custom_call.1} parent=51 // pred_check_branch
          %335 = sbr.rel (%p333) target = $region56
        $region55: #{tpu_custom_call.1} parent=51 // pred_region
          %vm336 = vcmask 257024
          %337 = vst.msk [vmem:[#allocation2] sm:$0xf] %vm336, 0.0
        $region56: #{tpu_custom_call.1} parent=51 // pred_fallthru
          _
        %s338 = smul.u32 %s27, 256
        %s339 = scalar_lea.vmem %s1, %s338
        %v340 = vld [vmem:[%s339] sm:$0xff]
        %v341 = vld [vmem:[%s339 + $0x8] sm:$0xff]
        %v342 = vld [vmem:[%s339 + $0x10] sm:$0xff]
        %v343 = vld [vmem:[%s339 + $0x18] sm:$0xff]
        %v344 = vld [vmem:[%s339 + $0x20] sm:$0xff]
        %v345 = vld [vmem:[%s339 + $0x28] sm:$0xff]
        %v346 = vld [vmem:[%s339 + $0x30] sm:$0xff]
        %v347 = vld [vmem:[%s339 + $0x38] sm:$0xff]
        %v348 = vld [vmem:[%s339 + $0x40] sm:$0xff]
        %v349 = vld [vmem:[%s339 + $0x48] sm:$0xff]
        %v350 = vld [vmem:[%s339 + $0x50] sm:$0xff]
        %v351 = vld [vmem:[%s339 + $0x58] sm:$0xff]
        %v352 = vld [vmem:[%s339 + $0x60] sm:$0xff]
        %v353 = vld [vmem:[%s339 + $0x68] sm:$0xff]
        %v354 = vld [vmem:[%s339 + $0x70] sm:$0xff]
        %v355 = vld [vmem:[%s339 + $0x78] sm:$0xff]
        %v356 = vld [vmem:[%s339 + $0x80] sm:$0xff]
        %v357 = vld [vmem:[%s339 + $0x88] sm:$0xff]
        %v358 = vld [vmem:[%s339 + $0x90] sm:$0xff]
        %v359 = vld [vmem:[%s339 + $0x98] sm:$0xff]
        %v360 = vld [vmem:[%s339 + $0xa0] sm:$0xff]
        %v361 = vld [vmem:[%s339 + $0xa8] sm:$0xff]
        %v362 = vld [vmem:[%s339 + $0xb0] sm:$0xff]
        %v363 = vld [vmem:[%s339 + $0xb8] sm:$0xff]
        %v364 = vld [vmem:[%s339 + $0xc0] sm:$0xff]
        %v365 = vld [vmem:[%s339 + $0xc8] sm:$0xff]
        %v366 = vld [vmem:[%s339 + $0xd0] sm:$0xff]
        %v367 = vld [vmem:[%s339 + $0xd8] sm:$0xff]
        %v368 = vld [vmem:[%s339 + $0xe0] sm:$0xff]
        %v369 = vld [vmem:[%s339 + $0xe8] sm:$0xff]
        %v370 = vld [vmem:[%s339 + $0xf0] sm:$0xff]
        %v371 = vld [vmem:[%s339 + $0xf8] sm:$0xff]
        %v372 = vld [vmem:[#allocation2] sm:$0xf]
        %v373 = vld [vmem:[%s330] sm:$0xff]
        %v375 = vcombine.high %v373, %v373
        %377 = vmatprep.subr.mxu0 0.0
        %378 = vmatpush1.msra.mxu0 %v340
        %379 = vmatprep.subr.mxu0 0.0
        %380 = vmatpush1.msra.mxu0 %v341
        %381 = vmatprep.subr.mxu0 0.0
        %382 = vmatpush1.msra.mxu0 %v342
        %383 = vmatprep.subr.mxu0 0.0
        %384 = vmatpush1.msra.mxu0 %v343
        %385 = vmatprep.subr.mxu0 0.0
        %386 = vmatpush1.msra.mxu0 %v344
        %387 = vmatprep.subr.mxu0 0.0
        %388 = vmatpush1.msra.mxu0 %v345
        %389 = vmatprep.subr.mxu0 0.0
        %390 = vmatpush1.msra.mxu0 %v346
        %391 = vmatprep.subr.mxu0 0.0
        %392 = vmatpush1.msra.mxu0 %v347
        %393 = vmatprep.subr.mxu0 0.0
        %394 = vmatpush1.msra.mxu0 %v348
        %395 = vmatprep.subr.mxu0 0.0
        %396 = vmatpush1.msra.mxu0 %v349
        %397 = vmatprep.subr.mxu0 0.0
        %398 = vmatpush1.msra.mxu0 %v350
        %399 = vmatprep.subr.mxu0 0.0
        %400 = vmatpush1.msra.mxu0 %v351
        %401 = vmatprep.subr.mxu0 0.0
        %402 = vmatpush1.msra.mxu0 %v352
        %403 = vmatprep.subr.mxu0 0.0
        %404 = vmatpush1.msra.mxu0 %v353
        %405 = vmatprep.subr.mxu0 0.0
        %406 = vmatpush1.msra.mxu0 %v354
        %407 = vmatprep.subr.mxu0 0.0
        %408 = vmatpush1.msra.mxu0 %v355
        %409 = vmatprep.subr.mxu0 0.0
        %410 = vmatpush1.msra.mxu0 %v356
        %411 = vmatprep.subr.mxu0 0.0
        %412 = vmatpush1.msra.mxu0 %v357
        %413 = vmatprep.subr.mxu0 0.0
        %414 = vmatpush1.msra.mxu0 %v358
        %415 = vmatprep.subr.mxu0 0.0
        %416 = vmatpush1.msra.mxu0 %v359
        %417 = vmatprep.subr.mxu0 0.0
        %418 = vmatpush1.msra.mxu0 %v360
        %419 = vmatprep.subr.mxu0 0.0
        %420 = vmatpush1.msra.mxu0 %v361
        %421 = vmatprep.subr.mxu0 0.0
        %422 = vmatpush1.msra.mxu0 %v362
        %423 = vmatprep.subr.mxu0 0.0
        %424 = vmatpush1.msra.mxu0 %v363
        %425 = vmatprep.subr.mxu0 0.0
        %426 = vmatpush1.msra.mxu0 %v364
        %427 = vmatprep.subr.mxu0 0.0
        %428 = vmatpush1.msra.mxu0 %v365
        %429 = vmatprep.subr.mxu0 0.0
        %430 = vmatpush1.msra.mxu0 %v366
        %431 = vmatprep.subr.mxu0 0.0
        %432 = vmatpush1.msra.mxu0 %v367
        %433 = vmatprep.subr.mxu0 0.0
        %434 = vmatpush1.msra.mxu0 %v368
        %435 = vmatprep.subr.mxu0 0.0
        %436 = vmatpush1.msra.mxu0 %v369
        %437 = vmatprep.subr.mxu0 0.0
        %438 = vmatpush1.msra.mxu0 %v370
        %439 = vmatprep.subr.mxu0 0.0
        %440 = vmatpush1.msra.mxu0 %v371
        %441 = vmatprep.mubr.f32.mxu0 %v375
        %442 = vmatmul.mubr.f32.gmra.mrb[0].mxu0 %v373
        %v443 = vpop.f32.mrb[0].mxu0
        %v444 = vadd.f32 0.0, %v443
        %v445 = vpop.f32.mrb[0].mxu0
        %446 = vdwg.mxu0
        %v447 = vadd.f32 %v372, %v444
        %vm448 = vcmask 257024
        %449 = vst.msk [vmem:[#allocation2] sm:$0xf] %vm448, %v447
        // Predicated region
        $region57: #{tpu_custom_call.1} parent=51 // pred_check
          %p450 = pneg %p332
        $region58: #{tpu_custom_call.1} parent=51 // pred_check_branch
          %452 = sbr.rel (%p450) target = $region60
        $region59: #{tpu_custom_call.1} parent=51 // pred_region
          %v453 = vld [vmem:[%s2] sm:$0xff]
          %v454 = vld [vmem:[#allocation2] sm:$0xf]
          %v455 = vld [vmem:[%s3] sm:$0xff]
          %457 = vset.pattern.permute.xlu0 0
          %458 = vperm.xlu0 %457, %v455
          %v459 = vpop.permute.xlu0 %458
          %vm461 = vcmask 31744
          %v463 = vsel %vm461, %v453, 0
          %vm465 = vcmask 1043456
          %v467 = vsel %vm465, %v454, 0
          %469 = vmatprep.subr.mxu0 0.0
          %470 = vmatpush1.msra.mxu0 %v467
          %471 = vmatprep.subr.mxu0 0.0
          %472 = vmatpush1.msra.mxu0 0.0
          %473 = vmatprep.subr.mxu0 0.0
          %474 = vmatpush1.msra.mxu0 0.0
          %475 = vmatprep.subr.mxu0 0.0
          %476 = vmatpush1.msra.mxu0 0.0
          %477 = vmatprep.subr.mxu0 0.0
          %478 = vmatpush1.msra.mxu0 0.0
          %479 = vmatprep.subr.mxu0 0.0
          %480 = vmatpush1.msra.mxu0 0.0
          %481 = vmatprep.subr.mxu0 0.0
          %482 = vmatpush1.msra.mxu0 0.0
          %483 = vmatprep.subr.mxu0 0.0
          %484 = vmatpush1.msra.mxu0 0.0
          %485 = vmatprep.subr.mxu0 0.0
          %486 = vmatpush1.msra.mxu0 0.0
          %487 = vmatprep.subr.mxu0 0.0
          %488 = vmatpush1.msra.mxu0 0.0
          %489 = vmatprep.subr.mxu0 0.0
          %490 = vmatpush1.msra.mxu0 0.0
          %491 = vmatprep.subr.mxu0 0.0
          %492 = vmatpush1.msra.mxu0 0.0
          %493 = vmatprep.subr.mxu0 0.0
          %494 = vmatpush1.msra.mxu0 0.0
          %495 = vmatprep.subr.mxu0 0.0
          %496 = vmatpush1.msra.mxu0 0.0
          %497 = vmatprep.subr.mxu0 0.0
          %498 = vmatpush1.msra.mxu0 0.0
          %499 = vmatprep.subr.mxu0 0.0
          %500 = vmatpush1.msra.mxu0 0.0
          %501 = vmatprep.subr.mxu0 0.0
          %502 = vmatpush1.msra.mxu0 0.0
          %503 = vmatprep.subr.mxu0 0.0
          %504 = vmatpush1.msra.mxu0 0.0
          %505 = vmatprep.subr.mxu0 0.0
          %506 = vmatpush1.msra.mxu0 0.0
          %507 = vmatprep.subr.mxu0 0.0
          %508 = vmatpush1.msra.mxu0 0.0
          %509 = vmatprep.subr.mxu0 0.0
          %510 = vmatpush1.msra.mxu0 0.0
          %511 = vmatprep.subr.mxu0 0.0
          %512 = vmatpush1.msra.mxu0 0.0
          %513 = vmatprep.subr.mxu0 0.0
          %514 = vmatpush1.msra.mxu0 0.0
          %515 = vmatprep.subr.mxu0 0.0
          %516 = vmatpush1.msra.mxu0 0.0
          %517 = vmatprep.subr.mxu0 0.0
          %518 = vmatpush1.msra.mxu0 0.0
          %519 = vmatprep.subr.mxu0 0.0
          %520 = vmatpush1.msra.mxu0 0.0
          %521 = vmatprep.subr.mxu0 0.0
          %522 = vmatpush1.msra.mxu0 0.0
          %523 = vmatprep.subr.mxu0 0.0
          %524 = vmatpush1.msra.mxu0 0.0
          %525 = vmatprep.subr.mxu0 0.0
          %526 = vmatpush1.msra.mxu0 0.0
          %527 = vmatprep.subr.mxu0 0.0
          %528 = vmatpush1.msra.mxu0 0.0
          %529 = vmatprep.subr.mxu0 0.0
          %530 = vmatpush1.msra.mxu0 0.0
          %531 = vmatprep.subr.mxu0 0.0
          %532 = vmatpush1.msra.mxu0 0.0
          %533 = vmatprep.mubr.f32.mxu0 0.0
          %534 = vmatmul.mubr.f32.gmra.mrb[0].mxu0 %v463
          %v535 = vpop.f32.mrb[0].mxu0
          %v536 = vadd.f32 %v459, %v535
          %v537 = vpop.f32.mrb[0].mxu0
          %538 = vdwg.mxu0
          %v539 = vadd.f32 %v536, 3.0
          %v540 = vmax.f32 %v539, 0.0
          %v541 = vmin.f32 %v540, 6.0
          %v542 = vmul.f32 %v536, %v541
          %v543 = vmul.f32 %v542, 0.16666667
          %v544 = vld [vmem:[%s4] sm:$0xf]
          %v545 = vld [vmem:[%s5] sm:$0xf]
          %547 = vset.pattern.permute.xlu0 0
          %548 = vperm.xlu0 %547, %v545
          %v549 = vpop.permute.xlu0 %548
          %vm551 = vcmask 64512
          %v553 = vsel %vm551, %v544, 0
          %555 = vmatprep.subr.mxu0 0.0
          %556 = vmatpush1.msra.mxu0 %v543
          %557 = vmatprep.subr.mxu0 0.0
          %558 = vmatpush1.msra.mxu0 0.0
          %559 = vmatprep.subr.mxu0 0.0
          %560 = vmatpush1.msra.mxu0 0.0
          %561 = vmatprep.subr.mxu0 0.0
          %562 = vmatpush1.msra.mxu0 0.0
          %563 = vmatprep.subr.mxu0 0.0
          %564 = vmatpush1.msra.mxu0 0.0
          %565 = vmatprep.subr.mxu0 0.0
          %566 = vmatpush1.msra.mxu0 0.0
          %567 = vmatprep.subr.mxu0 0.0
          %568 = vmatpush1.msra.mxu0 0.0
          %569 = vmatprep.subr.mxu0 0.0
          %570 = vmatpush1.msra.mxu0 0.0
          %571 = vmatprep.subr.mxu0 0.0
          %572 = vmatpush1.msra.mxu0 0.0
          %573 = vmatprep.subr.mxu0 0.0
          %574 = vmatpush1.msra.mxu0 0.0
          %575 = vmatprep.subr.mxu0 0.0
          %576 = vmatpush1.msra.mxu0 0.0
          %577 = vmatprep.subr.mxu0 0.0
          %578 = vmatpush1.msra.mxu0 0.0
          %579 = vmatprep.subr.mxu0 0.0
          %580 = vmatpush1.msra.mxu0 0.0
          %581 = vmatprep.subr.mxu0 0.0
          %582 = vmatpush1.msra.mxu0 0.0
          %583 = vmatprep.subr.mxu0 0.0
          %584 = vmatpush1.msra.mxu0 0.0
          %585 = vmatprep.subr.mxu0 0.0
          %586 = vmatpush1.msra.mxu0 0.0
          %587 = vmatprep.subr.mxu0 0.0
          %588 = vmatpush1.msra.mxu0 0.0
          %589 = vmatprep.subr.mxu0 0.0
          %590 = vmatpush1.msra.mxu0 0.0
          %591 = vmatprep.subr.mxu0 0.0
          %592 = vmatpush1.msra.mxu0 0.0
          %593 = vmatprep.subr.mxu0 0.0
          %594 = vmatpush1.msra.mxu0 0.0
          %595 = vmatprep.subr.mxu0 0.0
          %596 = vmatpush1.msra.mxu0 0.0
          %597 = vmatprep.subr.mxu0 0.0
          %598 = vmatpush1.msra.mxu0 0.0
          %599 = vmatprep.subr.mxu0 0.0
          %600 = vmatpush1.msra.mxu0 0.0
          %601 = vmatprep.subr.mxu0 0.0
          %602 = vmatpush1.msra.mxu0 0.0
          %603 = vmatprep.subr.mxu0 0.0
          %604 = vmatpush1.msra.mxu0 0.0
          %605 = vmatprep.subr.mxu0 0.0
          %606 = vmatpush1.msra.mxu0 0.0
          %607 = vmatprep.subr.mxu0 0.0
          %608 = vmatpush1.msra.mxu0 0.0
          %609 = vmatprep.subr.mxu0 0.0
          %610 = vmatpush1.msra.mxu0 0.0
          %611 = vmatprep.subr.mxu0 0.0
          %612 = vmatpush1.msra.mxu0 0.0
          %613 = vmatprep.subr.mxu0 0.0
          %614 = vmatpush1.msra.mxu0 0.0
          %615 = vmatprep.subr.mxu0 0.0
          %616 = vmatpush1.msra.mxu0 0.0
          %617 = vmatprep.subr.mxu0 0.0
          %618 = vmatpush1.msra.mxu0 0.0
          %619 = vmatprep.mubr.f32.mxu0 0.0
          %620 = vmatmul.mubr.f32.gmra.mrb[0].mxu0 %v553
          %v621 = vpop.f32.mrb[0].mxu0
          %v622 = vadd.f32 %v549, %v621
          %v623 = vpop.f32.mrb[0].mxu0
          %624 = vdwg.mxu0
          %v625 = vxor.u32 %v622, 2147483648
          %v626 = vmul.f32 %v625, 1.442695
          %v627 = vpow.pop %v626
          %v628 = vadd.f32 %v627, 1.0
          %v629 = vrcp.pop %v628
          %v630 = vmul.f32 1.0, %v629
          %v631 = vld [vmem:[%s6] sm:$0xf]
          %v632 = vld [vmem:[%s7] sm:$0xf]
          %634 = vset.pattern.permute.xlu0 0
          %635 = vperm.xlu0 %634, %v632
          %v636 = vpop.permute.xlu0 %635
          %639 = vrot.lane.b32.xlu0 %v543, 112
          %v640 = vpop.permute.xlu0 %639
          %v643 = vsel %vm551, %v631, 0
          %645 = vmatprep.subr.mxu0 0.0
          %646 = vmatpush1.msra.mxu0 %v640
          %647 = vmatprep.subr.mxu0 0.0
          %648 = vmatpush1.msra.mxu0 0.0
          %649 = vmatprep.subr.mxu0 0.0
          %650 = vmatpush1.msra.mxu0 0.0
          %651 = vmatprep.subr.mxu0 0.0
          %652 = vmatpush1.msra.mxu0 0.0
          %653 = vmatprep.subr.mxu0 0.0
          %654 = vmatpush1.msra.mxu0 0.0
          %655 = vmatprep.subr.mxu0 0.0
          %656 = vmatpush1.msra.mxu0 0.0
          %657 = vmatprep.subr.mxu0 0.0
          %658 = vmatpush1.msra.mxu0 0.0
          %659 = vmatprep.subr.mxu0 0.0
          %660 = vmatpush1.msra.mxu0 0.0
          %661 = vmatprep.subr.mxu0 0.0
          %662 = vmatpush1.msra.mxu0 0.0
          %663 = vmatprep.subr.mxu0 0.0
          %664 = vmatpush1.msra.mxu0 0.0
          %665 = vmatprep.subr.mxu0 0.0
          %666 = vmatpush1.msra.mxu0 0.0
          %667 = vmatprep.subr.mxu0 0.0
          %668 = vmatpush1.msra.mxu0 0.0
          %669 = vmatprep.subr.mxu0 0.0
          %670 = vmatpush1.msra.mxu0 0.0
          %671 = vmatprep.subr.mxu0 0.0
          %672 = vmatpush1.msra.mxu0 0.0
          %673 = vmatprep.subr.mxu0 0.0
          %674 = vmatpush1.msra.mxu0 0.0
          %675 = vmatprep.subr.mxu0 0.0
          %676 = vmatpush1.msra.mxu0 0.0
          %677 = vmatprep.subr.mxu0 0.0
          %678 = vmatpush1.msra.mxu0 0.0
          %679 = vmatprep.subr.mxu0 0.0
          %680 = vmatpush1.msra.mxu0 0.0
          %681 = vmatprep.subr.mxu0 0.0
          %682 = vmatpush1.msra.mxu0 0.0
          %683 = vmatprep.subr.mxu0 0.0
          %684 = vmatpush1.msra.mxu0 0.0
          %685 = vmatprep.subr.mxu0 0.0
          %686 = vmatpush1.msra.mxu0 0.0
          %687 = vmatprep.subr.mxu0 0.0
          %688 = vmatpush1.msra.mxu0 0.0
          %689 = vmatprep.subr.mxu0 0.0
          %690 = vmatpush1.msra.mxu0 0.0
          %691 = vmatprep.subr.mxu0 0.0
          %692 = vmatpush1.msra.mxu0 0.0
          %693 = vmatprep.subr.mxu0 0.0
          %694 = vmatpush1.msra.mxu0 0.0
          %695 = vmatprep.subr.mxu0 0.0
          %696 = vmatpush1.msra.mxu0 0.0
          %697 = vmatprep.subr.mxu0 0.0
          %698 = vmatpush1.msra.mxu0 0.0
          %699 = vmatprep.subr.mxu0 0.0
          %700 = vmatpush1.msra.mxu0 0.0
          %701 = vmatprep.subr.mxu0 0.0
          %702 = vmatpush1.msra.mxu0 0.0
          %703 = vmatprep.subr.mxu0 0.0
          %704 = vmatpush1.msra.mxu0 0.0
          %705 = vmatprep.subr.mxu0 0.0
          %706 = vmatpush1.msra.mxu0 0.0
          %707 = vmatprep.subr.mxu0 0.0
          %708 = vmatpush1.msra.mxu0 0.0
          %709 = vmatprep.mubr.f32.mxu0 0.0
          %710 = vmatmul.mubr.f32.gmra.mrb[0].mxu0 %v643
          %v711 = vpop.f32.mrb[0].mxu0
          %v712 = vadd.f32 %v636, %v711
          %v713 = vpop.f32.mrb[0].mxu0
          %714 = vdwg.mxu0
          %v715 = vxor.u32 %v712, 2147483648
          %v716 = vmul.f32 %v715, 1.442695
          %v717 = vpow.pop %v716
          %v718 = vadd.f32 %v717, 1.0
          %v719 = vrcp.pop %v718
          %v720 = vmul.f32 1.0, %v719
          %722 = vrot.lane.b32.xlu0 %v720, 16
          %v723 = vpop.permute.xlu0 %722
          %vm725 = vcmask 130048
          %v726 = vsel %vm725, %v630, %v723
          %727 = vst.msk [vmem:[%s321] sm:$0xf] %vm448, %v726
        $region60: #{tpu_custom_call.1} parent=51 // pred_fallthru
          _
        %s728 = sand.u32 %s217, 1
        %s729 = scalar_lea.sflag [#allocation4], %s728
        %s730 = sand.u32 %s217, 1
        %s731 = smul.addr %s730, 4
        %s732 = scalar_lea.vmem [#allocation3], %s731
        // Predicated region
        $region61: #{tpu_custom_call.1} parent=51 // pred_check
          %p733 = pneg %p227
        $region62: #{tpu_custom_call.1} parent=51 // pred_check_branch
          %735 = sbr.rel (%p733) target = $region64
        $region63: #{tpu_custom_call.1} parent=51 // pred_region
          %s737 = ssub.s32 64, 64
          %738 = vsyncadd %s729, %s737
          %s739 = smul.addr %s26, 64
          %s740 = scalar_lea.hbm %s8, %s739
          %s742 = sshll.u32 %s732, 4
          %s743 = int_to_ptr.vmem [resolvable:$true] %s742
          %745 = dma.vmem_to_hbm [thread:$0]  %s743, 64, %s740, %s729
        $region64: #{tpu_custom_call.1} parent=51 // pred_fallthru
          _
      $region52: #{tpu_custom_call.1} parent=5 // pred_fallthru
        _
      %p746 = scmp.le.s32.totalorder 2, %s17
      // Predicated region
      $region65: #{tpu_custom_call.1} parent=5 // pred_check
        %p747 = pneg %p746
      $region66: #{tpu_custom_call.1} parent=5 // pred_check_branch
        %749 = sbr.rel (%p747) target = $region68
      $region67: #{tpu_custom_call.1} parent=5 // pred_region
        %s750 = ssub.s32 %s17, 2
        // Predicated region
        $region69: #{tpu_custom_call.1} parent=67 // pred_check
          %p751 = pneg %p233
        $region70: #{tpu_custom_call.1} parent=67 // pred_check_branch
          %753 = sbr.rel (%p751) target = $region72
        $region71: #{tpu_custom_call.1} parent=67 // pred_region
          %s754 = sand.u32 %s218, 1
          %s755 = scalar_lea.sflag [#allocation4], %s754
          %s756 = sand.u32 %s218, 1
          %s757 = smul.addr %s756, 4
          %s758 = scalar_lea.vmem [#allocation3], %s757
          %759 = dma.done %s755, 64
        $region72: #{tpu_custom_call.1} parent=67 // pred_fallthru
          _
      $region68: #{tpu_custom_call.1} parent=5 // pred_fallthru
        _
    $region6: #{tpu_custom_call.1} parent=1 // loop_footer
      %s21 = sadd.s32 1, %s17
    $region7: #{tpu_custom_call.1} parent=1 // loop_footer_branch
      %16 = sbr.rel target = $region3
    $region8: #{tpu_custom_call.1} parent=1 // loop_exit
      _
    %760 = vsyncpa [#allocation4], 1
    %s761 = scalar_lea.sflag [#allocation4], 1
    %762 = vsyncpa %s761, 1

</llo_original>
